<compile_context>
chip_gen: v5e
topology: v5e:2x2
jax: 0.10.0
libtpu: 0.0.40
codegen_flags: <defaults>
</compile_context>

<pallas_src>
import jax
import jax.numpy as jnp
from jax.experimental import pallas as pl
from jax.experimental.pallas import tpu as pltpu

LANES = 128


def _round_up(a, b):
    return ((a + b - 1) // b) * b


def _fused_kernel(b_ref, x_ref, w_ref, o_ref):
    # b_ref: SMEM f32[1]            fused bias  b1 @ W2^T + b2
    # x_ref: VMEM f32[rpb, 256]     raw interleaved rows [x0_0, x1_0, x0_1, x1_1, ...]
    # w_ref: VMEM f32[256, 128]     constant de-interleave+weight matrix
    #                               (W[2j, j] = w_eff0, W[2j+1, j] = w_eff1, else 0)
    # o_ref: VMEM f32[rpb, 128]     lane-dense outputs, sample index = row*128 + lane
    o_ref[...] = (
        jnp.dot(
            x_ref[...],
            w_ref[...],
            preferred_element_type=jnp.float32,
            precision=jax.lax.Precision.HIGHEST,  # keep full f32 fidelity on the MXU
        )
        + b_ref[0]
    )


def circle_model_v0_forward(x, w1, b1, w2, b2, *, rows_per_block=2048):
    """Forward pass of CircleModelV0: layer_2(layer_1(x)).

    Args:
      x:  (N, 2) float32
      w1: (5, 2) float32  (PyTorch layer_1.weight, (out, in))
      b1: (5,)   float32
      w2: (1, 5) float32  (PyTorch layer_2.weight, (out, in))
      b2: (1,)   float32
    Returns:
      (N, 1) float32
    """
    n = x.shape[0]
    x = x.astype(jnp.float32)
    w1 = w1.astype(jnp.float32)
    b1 = b1.astype(jnp.float32)
    w2 = w2.astype(jnp.float32)
    b2 = b2.astype(jnp.float32)

    # --- Algebraic fusion of the two Linear layers (tiny, done once in XLA) ---
    w_eff = (w1.T @ w2.T).reshape(2)       # (2,)
    b_eff = (b1 @ w2.T + b2).reshape(1)    # (1,) -> SMEM operand

    # Constant (256,128) matrix: column j picks interleaved lanes 2j, 2j+1 and
    # applies the fused weights, so the kernel's single dot does
    # de-interleave + both Linears at once (MXU is otherwise idle).
    r = jnp.arange(2 * LANES)[:, None]     # (256, 1)
    c = jnp.arange(LANES)[None, :]         # (1, 128)
    w_mat = jnp.where(
        (r // 2) == c,
        jnp.where(r % 2 == 0, w_eff[0], w_eff[1]),
        0.0,
    ).astype(jnp.float32)                  # (256, 128), resident in VMEM

    # --- Zero-copy relayout of the input ---
    # Row-major (N,2) == flat interleaved (2N,) == (rows, 256). Padding (one copy)
    # is only materialised when N is not a multiple of 128.
    n_pad = max(_round_up(n, LANES), 8 * LANES)   # keep >= 8 sublane rows
    x_flat = x.reshape(-1)
    if n_pad != n:
        x_flat = jnp.pad(x_flat, (0, 2 * (n_pad - n)))
    total_rows = n_pad // LANES
    x2d = x_flat.reshape(total_rows, 2 * LANES)

    # --- Block size: big blocks amortise the ~0.35us/step overhead, but cap so the
    # grid keeps >= ~4 steps for v7x's two TensorCores when there is enough work. ---
    rpb = min(rows_per_block, _round_up(total_rows, 8))
    if total_rows >= 32:
        rpb = min(rpb, max(8, (total_rows // 4) // 8 * 8))
    rpb = max(8, (rpb // 8) * 8)
    grid = (pl.cdiv(total_rows, rpb),)            # partial edge block is masked

    out = pl.pallas_call(
        _fused_kernel,
        out_shape=jax.ShapeDtypeStruct((total_rows, LANES), jnp.float32),
        grid=grid,
        in_specs=[
            pl.BlockSpec(memory_space=pltpu.MemorySpace.SMEM),   # fused bias (1,)
            pl.BlockSpec((rpb, 2 * LANES), lambda i: (i, 0)),    # interleaved x slab
            pl.BlockSpec((2 * LANES, LANES), lambda i: (0, 0)),  # constant weights
        ],
        out_specs=pl.BlockSpec((rpb, LANES), lambda i: (i, 0)),
        compiler_params=pltpu.CompilerParams(
            dimension_semantics=("parallel",)),
    )(b_eff, x2d, w_mat)

    # Free reshapes back to (N, 1); the slice copy only happens when padding did.
    y = out.reshape(n_pad)
    if n_pad != n:
        y = y[:n]
    return y.reshape(n, 1)


def init_params(key):
    """Deterministic init mirroring nn.Linear defaults: U(-1/sqrt(fan_in), +)."""
    k1, k2, k3, k4 = jax.random.split(key, 4)
    bound1 = 1.0 / jnp.sqrt(2.0)   # fan_in = 2
    bound2 = 1.0 / jnp.sqrt(5.0)   # fan_in = 5
    w1 = jax.random.uniform(k1, (5, 2), jnp.float32, -bound1, bound1)
    b1 = jax.random.uniform(k2, (5,), jnp.float32, -bound1, bound1)
    w2 = jax.random.uniform(k3, (1, 5), jnp.float32, -bound2, bound2)
    b2 = jax.random.uniform(k4, (1,), jnp.float32, -bound2, bound2)
    return w1, b1, w2, b2


if __name__ == "__main__":
    key = jax.random.PRNGKey(0)
    k_x, k_p = jax.random.split(key)
    w1, b1, w2, b2 = init_params(k_p)

    fwd = jax.jit(circle_model_v0_forward)

    # Two small cases:
    #   N=4096 exercises the zero-copy / no-slice fast path (grid of 4 blocks).
    #   N=4200 exercises tail padding + a masked partial final block.
    for n in (4096, 4200):
        x = jax.random.normal(jax.random.fold_in(k_x, n), (n, 2), jnp.float32)
        out = jax.block_until_ready(fwd(x, w1, b1, w2, b2))
        ref = (x @ w1.T + b1) @ w2.T + b2
        assert out.shape == (n, 1)
        assert jnp.allclose(out, ref, atol=1e-5, rtol=1e-5), (
            n, float(jnp.max(jnp.abs(out - ref))))
    print("KERNEL_OK")
</pallas_src>

<mosaic_0001>
module attributes {stable_mosaic.version = 11 : i64} {
  func.func @_fused_kernel(%arg0: i32, %arg1: memref<1xf32, #tpu.memory_space<smem>>, %arg2: memref<8x256xf32, #tpu.memory_space<vmem>>, %arg3: memref<256x128xf32, #tpu.memory_space<vmem>>, %arg4: memref<8x128xf32, #tpu.memory_space<vmem>>) attributes {dimension_semantics = [#tpu.dimension_semantics<parallel>], iteration_bounds = array<i64: 4>, scalar_prefetch = 0 : i64, scratch_operands = 0 : i64, tpu.core_type = #tpu.core_type<tc>, window_params = [{transform_indices = @transform_0, window_bounds = array<i64: 1>}, {transform_indices = @transform_1, window_bounds = array<i64: 8, 256>}, {pipeline_mode = #tpu.pipeline_mode<synchronous>, transform_indices = @transform_2, window_bounds = array<i64: 256, 128>}, {transform_indices = @transform_3, window_bounds = array<i64: 8, 128>}]} {
    %c0 = arith.constant 0 : index
    %c0_0 = arith.constant 0 : index
    %0 = vector.load %arg2[%c0, %c0_0] : memref<8x256xf32, #tpu.memory_space<vmem>>, vector<8x256xf32>
    %c0_1 = arith.constant 0 : index
    %c0_2 = arith.constant 0 : index
    %1 = vector.load %arg3[%c0_1, %c0_2] : memref<256x128xf32, #tpu.memory_space<vmem>>, vector<256x128xf32>
    %cst = arith.constant dense<0.000000e+00> : vector<8x128xf32>
    %2 = tpu.matmul %0, %1, %cst {dimension_numbers = #tpu.dot_dimension_numbers<[1], [0], [0], [1], [0, 0, 1, 1], [], []>, precision = #tpu.contract_precision<fp32>} : vector<8x256xf32>, vector<256x128xf32>, vector<8x128xf32> -> vector<8x128xf32>
    %c0_3 = arith.constant 0 : index
    %3 = memref.load %arg1[%c0_3] : memref<1xf32, #tpu.memory_space<smem>>
    %4 = vector.broadcast %3 : f32 to vector<8x128xf32>
    %5 = arith.addf %2, %4 : vector<8x128xf32>
    %c0_4 = arith.constant 0 : index
    %c0_5 = arith.constant 0 : index
    %6 = vector.load %arg4[%c0_4, %c0_5] : memref<8x128xf32, #tpu.memory_space<vmem>>, vector<8x128xf32>
    tpu.vector_store %arg4[%c0_4, %c0_5], %5 {strides = array<i32>} : memref<8x128xf32, #tpu.memory_space<vmem>>, vector<8x128xf32>,
    return
  }
  func.func @transform_0(%arg0: i32) -> i32 {
    %c0_i32 = arith.constant 0 : i32
    %c0_i32_0 = arith.constant 0 : i32
    return %c0_i32 : i32
  }
  func.func @transform_1(%arg0: i32) -> (i32, i32) {
    %c0_i32 = arith.constant 0 : i32
    %c0_i32_0 = arith.constant 0 : i32
    return %arg0, %c0_i32 : i32, i32
  }
  func.func @transform_2(%arg0: i32) -> (i32, i32) {
    %c0_i32 = arith.constant 0 : i32
    %c0_i32_0 = arith.constant 0 : i32
    %c0_i32_1 = arith.constant 0 : i32
    return %c0_i32, %c0_i32_0 : i32, i32
  }
  func.func @transform_3(%arg0: i32) -> (i32, i32) {
    %c0_i32 = arith.constant 0 : i32
    %c0_i32_0 = arith.constant 0 : i32
    return %arg0, %c0_i32 : i32, i32
  }
}

</mosaic_0001>

<llo_original>
// kernel: circle_model_v0_forward.1
$region0: #{circle_model_v0_forward.1}
  #allocation0 [shape = 'u32[]', space=smem, size = 0x4, offset = 0x4, fixed_abs, tag = 'smem constant byte address 0x4 - core index']
  #allocation1 [shape = 'u32[72,128]{1,0:T(1,128)}', space=vmem, size = 0x9000, scoped, tag = 'internal scratch']
  #allocation2 [shape = 'f32[1]{0:T(128)S(6)}', space=smem, size = 0x200, scoped, tag = 'scoped memory for circle_model_v0_forward.1']
  %s0 = inlined_call_operand.<no memory space> [shape: f32[1], index: 0, kind: input, shape index: {}]
  %s1 = inlined_call_operand.vmem [shape: f32[32,256], index: 1, kind: input, shape index: {}]
  %s2 = inlined_call_operand.vmem [shape: f32[256,128], index: 2, kind: input, shape index: {}]
  %s3 = inlined_call_operand.hbm [shape: f32[32,128], index: 3, kind: output, shape index: {}]
  %s4 = sld [smem:[#allocation0]]
  $region45: #{circle_model_v0_forward.1} parent=0
    _
  %s6 = ssub.s32 1, %s4
  %s7 = scalar_select 0, %s6, %s4
  %8 = sst [smem:[#allocation2]] %s0
  $region1: #{circle_model_v0_forward.1} parent=0
    #allocation3 [shape = 'u8[8192]{0}', space=vmem, size = 0x2000, scoped, tag = 'output window, operand 0']
    #allocation4 [shape = 's32[2]{0}', space=sflag, size = 0x8, scoped, tag = 'scoped memory for circle_model_v0_forward.1']
    %9 = vsyncpa [#allocation4], 0
    %s10 = scalar_lea.sflag [#allocation4], 1
    %11 = vsyncpa %s10, 0
    loop: start=0, step=1, limit=6
    $region2: #{circle_model_v0_forward.1} parent=1 // loop_pre_header
      _
    $region3: #{circle_model_v0_forward.1} parent=1 // loop_header
      %s13 = sphi 0, %s17
      %p14 = scmp.ge.s32.totalorder %s13, 6
      %s21 = sphi 0, %s21
      %s23 = sphi 0, %s21
      %s24 = sphi 0, %s23
      %s38 = sphi 0, %s24
      %s44 = sphi 0, %s46
      %s47 = sphi 0, %s44
      %s48 = sphi 0, %s47
      %s64 = sphi 0, %s48
      %s68 = sphi 0, %s68
      %s70 = sphi 0, %s68
      %s71 = sphi 0, %s70
      %s85 = sphi 0, %s71
      %s91 = sphi 0, %s93
      %s94 = sphi 0, %s91
      %s95 = sphi 0, %s94
      %s111 = sphi 0, %s95
    $region4: #{circle_model_v0_forward.1} parent=1 // loop_header_branch
      %16 = sbr.rel (%p14) target = $region8
    $region5: #{circle_model_v0_forward.1} parent=1 // loop_body
      %s18 = ssub.s32 %s13, 1
      %s19 = ssub.s32 %s13, 2
      %s20 = sadd.s32 %s13, 1
      %s22 = sadd.s32 %s21, 1
      %p25 = scmp.eq.s32.totalorder %s13, 3
      %p26 = scmp.ne.s32.totalorder %s21, %s23
      %p27 = scmp.eq.s32.totalorder %s13, 0
      %p28 = por %p26, %p27
      %p29 = scmp.ne.s32.totalorder %s21, %s23
      %p30 = scmp.eq.s32.totalorder %s18, 3
      %p31 = por %p29, %p30
      %p32 = scmp.ne.s32.totalorder %s23, %s24
      %p33 = scmp.eq.s32.totalorder %s18, 0
      %p34 = por %p32, %p33
      %p35 = scmp.ne.s32.totalorder %s23, %s24
      %p36 = scmp.eq.s32.totalorder %s19, 3
      %p37 = por %p35, %p36
      %p39 = scmp.ne.s32.totalorder %s24, %s38
      %p40 = scmp.eq.s32.totalorder %s19, 0
      %p41 = por %p39, %p40
      %s42 = ssub.s32 %s13, %s20
      %p43 = scmp.eq.s32.totalorder %s42, 0
      %s45 = sadd.s32 %s44, 1
      %s46 = scalar_select %p43, %s44, %s45
      %p49 = pneg %p43
      %p50 = scmp.eq.s32.totalorder %s13, 3
      %p51 = por %p49, %p50
      %p52 = scmp.ne.s32.totalorder %s44, %s47
      %p53 = scmp.eq.s32.totalorder %s13, 0
      %p54 = por %p52, %p53
      %p55 = scmp.ne.s32.totalorder %s44, %s47
      %p56 = scmp.eq.s32.totalorder %s18, 3
      %p57 = por %p55, %p56
      %p58 = scmp.ne.s32.totalorder %s47, %s48
      %p59 = scmp.eq.s32.totalorder %s18, 0
      %p60 = por %p58, %p59
      %p61 = scmp.ne.s32.totalorder %s47, %s48
      %p62 = scmp.eq.s32.totalorder %s19, 3
      %p63 = por %p61, %p62
      %p65 = scmp.ne.s32.totalorder %s48, %s64
      %p66 = scmp.eq.s32.totalorder %s19, 0
      %p67 = por %p65, %p66
      %s69 = sadd.s32 %s68, 1
      %p72 = scmp.eq.s32.totalorder %s13, 3
      %p73 = scmp.ne.s32.totalorder %s68, %s70
      %p74 = scmp.eq.s32.totalorder %s13, 0
      %p75 = por %p73, %p74
      %p76 = scmp.ne.s32.totalorder %s68, %s70
      %p77 = scmp.eq.s32.totalorder %s18, 3
      %p78 = por %p76, %p77
      %p79 = scmp.ne.s32.totalorder %s70, %s71
      %p80 = scmp.eq.s32.totalorder %s18, 0
      %p81 = por %p79, %p80
      %p82 = scmp.ne.s32.totalorder %s70, %s71
      %p83 = scmp.eq.s32.totalorder %s19, 3
      %p84 = por %p82, %p83
      %p86 = scmp.ne.s32.totalorder %s71, %s85
      %p87 = scmp.eq.s32.totalorder %s19, 0
      %p88 = por %p86, %p87
      %s89 = ssub.s32 %s13, %s20
      %p90 = scmp.eq.s32.totalorder %s89, 0
      %s92 = sadd.s32 %s91, 1
      %s93 = scalar_select %p90, %s91, %s92
      %p96 = pneg %p90
      %p97 = scmp.eq.s32.totalorder %s13, 3
      %p98 = por %p96, %p97
      %p99 = scmp.ne.s32.totalorder %s91, %s94
      %p100 = scmp.eq.s32.totalorder %s13, 0
      %p101 = por %p99, %p100
      %p102 = scmp.ne.s32.totalorder %s91, %s94
      %p103 = scmp.eq.s32.totalorder %s18, 3
      %p104 = por %p102, %p103
      %p105 = scmp.ne.s32.totalorder %s94, %s95
      %p106 = scmp.eq.s32.totalorder %s18, 0
      %p107 = por %p105, %p106
      %p108 = scmp.ne.s32.totalorder %s94, %s95
      %p109 = scmp.eq.s32.totalorder %s19, 3
      %p110 = por %p108, %p109
      %p112 = scmp.ne.s32.totalorder %s95, %s111
      %p113 = scmp.eq.s32.totalorder %s19, 0
      %p114 = por %p112, %p113
      %p115 = scmp.le.s32.totalorder 1, %s13
      %p116 = scmp.lt.s32.totalorder %s13, 5
      %p117 = pnand %p115, %p116
      %p118 = pneg %p117
      // Predicated region
      $region9: #{circle_model_v0_forward.1} parent=5 // pred_check
        _
      $region10: #{circle_model_v0_forward.1} parent=5 // pred_check_branch
        %120 = sbr.rel (%p117) target = $region12
      $region11: #{circle_model_v0_forward.1} parent=5 // pred_region
        %s121 = ssub.s32 %s13, 1
        // Predicated region
        $region13: #{circle_model_v0_forward.1} parent=11 // pred_check
          %p122 = pneg %p34
        $region14: #{circle_model_v0_forward.1} parent=11 // pred_check_branch
          %124 = sbr.rel (%p122) target = $region16
        $region15: #{circle_model_v0_forward.1} parent=11 // pred_region
          _
        $region16: #{circle_model_v0_forward.1} parent=11 // pred_fallthru
          _
        // Predicated region
        $region17: #{circle_model_v0_forward.1} parent=11 // pred_check
          %p125 = pneg %p81
        $region18: #{circle_model_v0_forward.1} parent=11 // pred_check_branch
          %127 = sbr.rel (%p125) target = $region20
        $region19: #{circle_model_v0_forward.1} parent=11 // pred_region
          _
        $region20: #{circle_model_v0_forward.1} parent=11 // pred_fallthru
          _
      $region12: #{circle_model_v0_forward.1} parent=5 // pred_fallthru
        _
      %p128 = scmp.lt.s32.totalorder %s13, 4
      // Predicated region
      $region21: #{circle_model_v0_forward.1} parent=5 // pred_check
        %p129 = pneg %p128
      $region22: #{circle_model_v0_forward.1} parent=5 // pred_check_branch
        %131 = sbr.rel (%p129) target = $region24
      $region23: #{circle_model_v0_forward.1} parent=5 // pred_region
        // Predicated region
        $region25: #{circle_model_v0_forward.1} parent=23 // pred_check
          %p132 = pneg %p54
        $region26: #{circle_model_v0_forward.1} parent=23 // pred_check_branch
          %134 = sbr.rel (%p132) target = $region28
        $region27: #{circle_model_v0_forward.1} parent=23 // pred_region
          %p135 = scmp.lt.s32.totalorder %s13, 3
          %s136 = scalar_select %p135, %s13, 3
          %s137 = smul.addr %s136, 2
          %s138 = smul.addr %s137, 8
          %s139 = scalar_lea.vmem %s1, %s138
        $region28: #{circle_model_v0_forward.1} parent=23 // pred_fallthru
          _
      $region24: #{circle_model_v0_forward.1} parent=5 // pred_fallthru
        _
      %p140 = scmp.le.s32.totalorder 1, %s13
      %p141 = scmp.lt.s32.totalorder %s13, 5
      %p142 = pnand %p140, %p141
      %p143 = pneg %p142
      // Predicated region
      $region29: #{circle_model_v0_forward.1} parent=5 // pred_check
        _
      $region30: #{circle_model_v0_forward.1} parent=5 // pred_check_branch
        %145 = sbr.rel (%p142) target = $region32
      $region31: #{circle_model_v0_forward.1} parent=5 // pred_region
        %s146 = ssub.s32 %s13, 1
        %p147 = pneg %p34
        %p148 = pneg %p31
        %p149 = scmp.lt.s32.totalorder %s18, 3
        %s150 = scalar_select %p149, %s18, 3
        %s151 = smul.addr %s150, 2
        %s152 = smul.addr %s151, 8
        %s153 = scalar_lea.vmem %s1, %s152
        %p154 = pneg %p60
        %p155 = pneg %p57
        %p156 = pneg %p81
        %p157 = pneg %p78
        %p158 = pneg %p107
        %p159 = pneg %p104
        %s160 = sand.u32 %s94, 1
        %s161 = scalar_lea.sflag [#allocation4], %s160
        %s162 = sand.u32 %s94, 1
        %s163 = smul.addr %s162, 8
        %s164 = scalar_lea.vmem [#allocation3], %s163
        %p165 = scmp.lt.s32.totalorder %s18, 3
        %s166 = scalar_select %p165, %s18, 3
        %s167 = smul.addr %s166, 2
        %s168 = smul.addr %s167, 8
        %s169 = scalar_lea.vmem %s1, %s168
        %v170 = vld [vmem:[%s169] sm:$0xff]
        %v171 = vld [vmem:[%s169 + $0x8] sm:$0xff]
        %v172 = vld [vmem:[%s2] sm:$0xff]
        %v173 = vld [vmem:[%s2 + $0x8] sm:$0xff]
        %v174 = vld [vmem:[%s2 + $0x10] sm:$0xff]
        %v175 = vld [vmem:[%s2 + $0x18] sm:$0xff]
        %v176 = vld [vmem:[%s2 + $0x20] sm:$0xff]
        %v177 = vld [vmem:[%s2 + $0x28] sm:$0xff]
        %v178 = vld [vmem:[%s2 + $0x30] sm:$0xff]
        %v179 = vld [vmem:[%s2 + $0x38] sm:$0xff]
        %v180 = vld [vmem:[%s2 + $0x40] sm:$0xff]
        %v181 = vld [vmem:[%s2 + $0x48] sm:$0xff]
        %v182 = vld [vmem:[%s2 + $0x50] sm:$0xff]
        %v183 = vld [vmem:[%s2 + $0x58] sm:$0xff]
        %v184 = vld [vmem:[%s2 + $0x60] sm:$0xff]
        %v185 = vld [vmem:[%s2 + $0x68] sm:$0xff]
        %v186 = vld [vmem:[%s2 + $0x70] sm:$0xff]
        %v187 = vld [vmem:[%s2 + $0x78] sm:$0xff]
        %v188 = vld [vmem:[%s2 + $0x80] sm:$0xff]
        %v189 = vld [vmem:[%s2 + $0x88] sm:$0xff]
        %v190 = vld [vmem:[%s2 + $0x90] sm:$0xff]
        %v191 = vld [vmem:[%s2 + $0x98] sm:$0xff]
        %v192 = vld [vmem:[%s2 + $0xa0] sm:$0xff]
        %v193 = vld [vmem:[%s2 + $0xa8] sm:$0xff]
        %v194 = vld [vmem:[%s2 + $0xb0] sm:$0xff]
        %v195 = vld [vmem:[%s2 + $0xb8] sm:$0xff]
        %v196 = vld [vmem:[%s2 + $0xc0] sm:$0xff]
        %v197 = vld [vmem:[%s2 + $0xc8] sm:$0xff]
        %v198 = vld [vmem:[%s2 + $0xd0] sm:$0xff]
        %v199 = vld [vmem:[%s2 + $0xd8] sm:$0xff]
        %v200 = vld [vmem:[%s2 + $0xe0] sm:$0xff]
        %v201 = vld [vmem:[%s2 + $0xe8] sm:$0xff]
        %v202 = vld [vmem:[%s2 + $0xf0] sm:$0xff]
        %v203 = vld [vmem:[%s2 + $0xf8] sm:$0xff]
        %s204 = sld [smem:[#allocation2]]
        %v205 = vstv %s204
        %v206 = vand.u32 %v187, 4294901760
        %207 = vmatpush.msra.mxu0 %v206
        %v208 = vand.u32 %v186, 4294901760
        %209 = vmatpush.msra.mxu0 %v208
        %v210 = vand.u32 %v185, 4294901760
        %211 = vmatpush.msra.mxu0 %v210
        %v212 = vand.u32 %v184, 4294901760
        %213 = vmatpush.msra.mxu0 %v212
        %v214 = vand.u32 %v183, 4294901760
        %215 = vmatpush.msra.mxu0 %v214
        %v216 = vand.u32 %v182, 4294901760
        %217 = vmatpush.msra.mxu0 %v216
        %v218 = vand.u32 %v181, 4294901760
        %219 = vmatpush.msra.mxu0 %v218
        %v220 = vand.u32 %v180, 4294901760
        %221 = vmatpush.msra.mxu0 %v220
        %v222 = vand.u32 %v179, 4294901760
        %223 = vmatpush.msra.mxu0 %v222
        %v224 = vand.u32 %v178, 4294901760
        %225 = vmatpush.msra.mxu0 %v224
        %v226 = vand.u32 %v177, 4294901760
        %227 = vmatpush.msra.mxu0 %v226
        %v228 = vand.u32 %v176, 4294901760
        %229 = vmatpush.msra.mxu0 %v228
        %v230 = vand.u32 %v175, 4294901760
        %231 = vmatpush.msra.mxu0 %v230
        %v232 = vand.u32 %v174, 4294901760
        %233 = vmatpush.msra.mxu0 %v232
        %v234 = vand.u32 %v173, 4294901760
        %235 = vmatpush.msra.mxu0 %v234
        %v236 = vand.u32 %v172, 4294901760
        %237 = vmatpush.msra.mxu0 %v236
        %v238 = vand.u32 %v170, 4294901760
        %v239 = vsub.f32 %v170, %v238
        %v240 = vand.u32 %v239, 4294901760
        %v241 = vsub.f32 %v239, %v240
        %v242 = vand.u32 %v241, 4294901760
        %243 = vmatmul.f32.gmra.mxu0 %v242
        %v244 = vpop.f32.mrf.mxu0
        %v245 = vadd.f32 %v205, %v244
        %246 = vdwg.mxu0
        %v247 = vand.u32 %v187, 4294901760
        %v248 = vsub.f32 %v187, %v247
        %v249 = vand.u32 %v248, 4294901760
        %v250 = vsub.f32 %v248, %v249
        %v251 = vand.u32 %v250, 4294901760
        %252 = vmatpush.msra.mxu0 %v251
        %v253 = vand.u32 %v186, 4294901760
        %v254 = vsub.f32 %v186, %v253
        %v255 = vand.u32 %v254, 4294901760
        %v256 = vsub.f32 %v254, %v255
        %v257 = vand.u32 %v256, 4294901760
        %258 = vmatpush.msra.mxu0 %v257
        %v259 = vand.u32 %v185, 4294901760
        %v260 = vsub.f32 %v185, %v259
        %v261 = vand.u32 %v260, 4294901760
        %v262 = vsub.f32 %v260, %v261
        %v263 = vand.u32 %v262, 4294901760
        %264 = vmatpush.msra.mxu0 %v263
        %v265 = vand.u32 %v184, 4294901760
        %v266 = vsub.f32 %v184, %v265
        %v267 = vand.u32 %v266, 4294901760
        %v268 = vsub.f32 %v266, %v267
        %v269 = vand.u32 %v268, 4294901760
        %270 = vmatpush.msra.mxu0 %v269
        %v271 = vand.u32 %v183, 4294901760
        %v272 = vsub.f32 %v183, %v271
        %v273 = vand.u32 %v272, 4294901760
        %v274 = vsub.f32 %v272, %v273
        %v275 = vand.u32 %v274, 4294901760
        %276 = vmatpush.msra.mxu0 %v275
        %v277 = vand.u32 %v182, 4294901760
        %v278 = vsub.f32 %v182, %v277
        %v279 = vand.u32 %v278, 4294901760
        %v280 = vsub.f32 %v278, %v279
        %v281 = vand.u32 %v280, 4294901760
        %282 = vmatpush.msra.mxu0 %v281
        %v283 = vand.u32 %v181, 4294901760
        %v284 = vsub.f32 %v181, %v283
        %v285 = vand.u32 %v284, 4294901760
        %v286 = vsub.f32 %v284, %v285
        %v287 = vand.u32 %v286, 4294901760
        %288 = vmatpush.msra.mxu0 %v287
        %v289 = vand.u32 %v180, 4294901760
        %v290 = vsub.f32 %v180, %v289
        %v291 = vand.u32 %v290, 4294901760
        %v292 = vsub.f32 %v290, %v291
        %v293 = vand.u32 %v292, 4294901760
        %294 = vmatpush.msra.mxu0 %v293
        %v295 = vand.u32 %v179, 4294901760
        %v296 = vsub.f32 %v179, %v295
        %v297 = vand.u32 %v296, 4294901760
        %v298 = vsub.f32 %v296, %v297
        %v299 = vand.u32 %v298, 4294901760
        %300 = vmatpush.msra.mxu0 %v299
        %v301 = vand.u32 %v178, 4294901760
        %v302 = vsub.f32 %v178, %v301
        %v303 = vand.u32 %v302, 4294901760
        %v304 = vsub.f32 %v302, %v303
        %v305 = vand.u32 %v304, 4294901760
        %306 = vmatpush.msra.mxu0 %v305
        %v307 = vand.u32 %v177, 4294901760
        %v308 = vsub.f32 %v177, %v307
        %v309 = vand.u32 %v308, 4294901760
        %v310 = vsub.f32 %v308, %v309
        %v311 = vand.u32 %v310, 4294901760
        %312 = vmatpush.msra.mxu0 %v311
        %v313 = vand.u32 %v176, 4294901760
        %v314 = vsub.f32 %v176, %v313
        %v315 = vand.u32 %v314, 4294901760
        %v316 = vsub.f32 %v314, %v315
        %v317 = vand.u32 %v316, 4294901760
        %318 = vmatpush.msra.mxu0 %v317
        %v319 = vand.u32 %v175, 4294901760
        %v320 = vsub.f32 %v175, %v319
        %v321 = vand.u32 %v320, 4294901760
        %v322 = vsub.f32 %v320, %v321
        %v323 = vand.u32 %v322, 4294901760
        %324 = vmatpush.msra.mxu0 %v323
        %v325 = vand.u32 %v174, 4294901760
        %v326 = vsub.f32 %v174, %v325
        %v327 = vand.u32 %v326, 4294901760
        %v328 = vsub.f32 %v326, %v327
        %v329 = vand.u32 %v328, 4294901760
        %330 = vmatpush.msra.mxu0 %v329
        %v331 = vand.u32 %v173, 4294901760
        %v332 = vsub.f32 %v173, %v331
        %v333 = vand.u32 %v332, 4294901760
        %v334 = vsub.f32 %v332, %v333
        %v335 = vand.u32 %v334, 4294901760
        %336 = vmatpush.msra.mxu0 %v335
        %v337 = vand.u32 %v172, 4294901760
        %v338 = vsub.f32 %v172, %v337
        %v339 = vand.u32 %v338, 4294901760
        %v340 = vsub.f32 %v338, %v339
        %v341 = vand.u32 %v340, 4294901760
        %342 = vmatpush.msra.mxu0 %v341
        %v343 = vand.u32 %v170, 4294901760
        %344 = vmatmul.f32.gmra.mxu0 %v343
        %v345 = vpop.f32.mrf.mxu0
        %v346 = vadd.f32 %v245, %v345
        %347 = vdwg.mxu0
        %v348 = vand.u32 %v187, 4294901760
        %v349 = vsub.f32 %v187, %v348
        %350 = vmatpush.msra.mxu0 %v349
        %v351 = vand.u32 %v186, 4294901760
        %v352 = vsub.f32 %v186, %v351
        %353 = vmatpush.msra.mxu0 %v352
        %v354 = vand.u32 %v185, 4294901760
        %v355 = vsub.f32 %v185, %v354
        %356 = vmatpush.msra.mxu0 %v355
        %v357 = vand.u32 %v184, 4294901760
        %v358 = vsub.f32 %v184, %v357
        %359 = vmatpush.msra.mxu0 %v358
        %v360 = vand.u32 %v183, 4294901760
        %v361 = vsub.f32 %v183, %v360
        %362 = vmatpush.msra.mxu0 %v361
        %v363 = vand.u32 %v182, 4294901760
        %v364 = vsub.f32 %v182, %v363
        %365 = vmatpush.msra.mxu0 %v364
        %v366 = vand.u32 %v181, 4294901760
        %v367 = vsub.f32 %v181, %v366
        %368 = vmatpush.msra.mxu0 %v367
        %v369 = vand.u32 %v180, 4294901760
        %v370 = vsub.f32 %v180, %v369
        %371 = vmatpush.msra.mxu0 %v370
        %v372 = vand.u32 %v179, 4294901760
        %v373 = vsub.f32 %v179, %v372
        %374 = vmatpush.msra.mxu0 %v373
        %v375 = vand.u32 %v178, 4294901760
        %v376 = vsub.f32 %v178, %v375
        %377 = vmatpush.msra.mxu0 %v376
        %v378 = vand.u32 %v177, 4294901760
        %v379 = vsub.f32 %v177, %v378
        %380 = vmatpush.msra.mxu0 %v379
        %v381 = vand.u32 %v176, 4294901760
        %v382 = vsub.f32 %v176, %v381
        %383 = vmatpush.msra.mxu0 %v382
        %v384 = vand.u32 %v175, 4294901760
        %v385 = vsub.f32 %v175, %v384
        %386 = vmatpush.msra.mxu0 %v385
        %v387 = vand.u32 %v174, 4294901760
        %v388 = vsub.f32 %v174, %v387
        %389 = vmatpush.msra.mxu0 %v388
        %v390 = vand.u32 %v173, 4294901760
        %v391 = vsub.f32 %v173, %v390
        %392 = vmatpush.msra.mxu0 %v391
        %v393 = vand.u32 %v172, 4294901760
        %v394 = vsub.f32 %v172, %v393
        %395 = vmatpush.msra.mxu0 %v394
        %v396 = vand.u32 %v170, 4294901760
        %v397 = vsub.f32 %v170, %v396
        %398 = vmatmul.f32.gmra.mxu0 %v397
        %v399 = vpop.f32.mrf.mxu0
        %v400 = vadd.f32 %v346, %v399
        %401 = vdwg.mxu0
        %v402 = vand.u32 %v187, 4294901760
        %403 = vmatpush.msra.mxu0 %v402
        %v404 = vand.u32 %v186, 4294901760
        %405 = vmatpush.msra.mxu0 %v404
        %v406 = vand.u32 %v185, 4294901760
        %407 = vmatpush.msra.mxu0 %v406
        %v408 = vand.u32 %v184, 4294901760
        %409 = vmatpush.msra.mxu0 %v408
        %v410 = vand.u32 %v183, 4294901760
        %411 = vmatpush.msra.mxu0 %v410
        %v412 = vand.u32 %v182, 4294901760
        %413 = vmatpush.msra.mxu0 %v412
        %v414 = vand.u32 %v181, 4294901760
        %415 = vmatpush.msra.mxu0 %v414
        %v416 = vand.u32 %v180, 4294901760
        %417 = vmatpush.msra.mxu0 %v416
        %v418 = vand.u32 %v179, 4294901760
        %419 = vmatpush.msra.mxu0 %v418
        %v420 = vand.u32 %v178, 4294901760
        %421 = vmatpush.msra.mxu0 %v420
        %v422 = vand.u32 %v177, 4294901760
        %423 = vmatpush.msra.mxu0 %v422
        %v424 = vand.u32 %v176, 4294901760
        %425 = vmatpush.msra.mxu0 %v424
        %v426 = vand.u32 %v175, 4294901760
        %427 = vmatpush.msra.mxu0 %v426
        %v428 = vand.u32 %v174, 4294901760
        %429 = vmatpush.msra.mxu0 %v428
        %v430 = vand.u32 %v173, 4294901760
        %431 = vmatpush.msra.mxu0 %v430
        %v432 = vand.u32 %v172, 4294901760
        %433 = vmatpush.msra.mxu0 %v432
        %v434 = vand.u32 %v170, 4294901760
        %v435 = vsub.f32 %v170, %v434
        %v436 = vand.u32 %v435, 4294901760
        %437 = vmatmul.f32.gmra.mxu0 %v436
        %v438 = vpop.f32.mrf.mxu0
        %v439 = vadd.f32 %v400, %v438
        %440 = vdwg.mxu0
        %v441 = vand.u32 %v187, 4294901760
        %v442 = vsub.f32 %v187, %v441
        %v443 = vand.u32 %v442, 4294901760
        %444 = vmatpush.msra.mxu0 %v443
        %v445 = vand.u32 %v186, 4294901760
        %v446 = vsub.f32 %v186, %v445
        %v447 = vand.u32 %v446, 4294901760
        %448 = vmatpush.msra.mxu0 %v447
        %v449 = vand.u32 %v185, 4294901760
        %v450 = vsub.f32 %v185, %v449
        %v451 = vand.u32 %v450, 4294901760
        %452 = vmatpush.msra.mxu0 %v451
        %v453 = vand.u32 %v184, 4294901760
        %v454 = vsub.f32 %v184, %v453
        %v455 = vand.u32 %v454, 4294901760
        %456 = vmatpush.msra.mxu0 %v455
        %v457 = vand.u32 %v183, 4294901760
        %v458 = vsub.f32 %v183, %v457
        %v459 = vand.u32 %v458, 4294901760
        %460 = vmatpush.msra.mxu0 %v459
        %v461 = vand.u32 %v182, 4294901760
        %v462 = vsub.f32 %v182, %v461
        %v463 = vand.u32 %v462, 4294901760
        %464 = vmatpush.msra.mxu0 %v463
        %v465 = vand.u32 %v181, 4294901760
        %v466 = vsub.f32 %v181, %v465
        %v467 = vand.u32 %v466, 4294901760
        %468 = vmatpush.msra.mxu0 %v467
        %v469 = vand.u32 %v180, 4294901760
        %v470 = vsub.f32 %v180, %v469
        %v471 = vand.u32 %v470, 4294901760
        %472 = vmatpush.msra.mxu0 %v471
        %v473 = vand.u32 %v179, 4294901760
        %v474 = vsub.f32 %v179, %v473
        %v475 = vand.u32 %v474, 4294901760
        %476 = vmatpush.msra.mxu0 %v475
        %v477 = vand.u32 %v178, 4294901760
        %v478 = vsub.f32 %v178, %v477
        %v479 = vand.u32 %v478, 4294901760
        %480 = vmatpush.msra.mxu0 %v479
        %v481 = vand.u32 %v177, 4294901760
        %v482 = vsub.f32 %v177, %v481
        %v483 = vand.u32 %v482, 4294901760
        %484 = vmatpush.msra.mxu0 %v483
        %v485 = vand.u32 %v176, 4294901760
        %v486 = vsub.f32 %v176, %v485
        %v487 = vand.u32 %v486, 4294901760
        %488 = vmatpush.msra.mxu0 %v487
        %v489 = vand.u32 %v175, 4294901760
        %v490 = vsub.f32 %v175, %v489
        %v491 = vand.u32 %v490, 4294901760
        %492 = vmatpush.msra.mxu0 %v491
        %v493 = vand.u32 %v174, 4294901760
        %v494 = vsub.f32 %v174, %v493
        %v495 = vand.u32 %v494, 4294901760
        %496 = vmatpush.msra.mxu0 %v495
        %v497 = vand.u32 %v173, 4294901760
        %v498 = vsub.f32 %v173, %v497
        %v499 = vand.u32 %v498, 4294901760
        %500 = vmatpush.msra.mxu0 %v499
        %v501 = vand.u32 %v172, 4294901760
        %v502 = vsub.f32 %v172, %v501
        %v503 = vand.u32 %v502, 4294901760
        %504 = vmatpush.msra.mxu0 %v503
        %v505 = vand.u32 %v170, 4294901760
        %506 = vmatmul.f32.gmra.mxu0 %v505
        %v507 = vpop.f32.mrf.mxu0
        %v508 = vadd.f32 %v439, %v507
        %509 = vdwg.mxu0
        %v510 = vand.u32 %v187, 4294901760
        %511 = vmatpush.msra.mxu0 %v510
        %v512 = vand.u32 %v186, 4294901760
        %513 = vmatpush.msra.mxu0 %v512
        %v514 = vand.u32 %v185, 4294901760
        %515 = vmatpush.msra.mxu0 %v514
        %v516 = vand.u32 %v184, 4294901760
        %517 = vmatpush.msra.mxu0 %v516
        %v518 = vand.u32 %v183, 4294901760
        %519 = vmatpush.msra.mxu0 %v518
        %v520 = vand.u32 %v182, 4294901760
        %521 = vmatpush.msra.mxu0 %v520
        %v522 = vand.u32 %v181, 4294901760
        %523 = vmatpush.msra.mxu0 %v522
        %v524 = vand.u32 %v180, 4294901760
        %525 = vmatpush.msra.mxu0 %v524
        %v526 = vand.u32 %v179, 4294901760
        %527 = vmatpush.msra.mxu0 %v526
        %v528 = vand.u32 %v178, 4294901760
        %529 = vmatpush.msra.mxu0 %v528
        %v530 = vand.u32 %v177, 4294901760
        %531 = vmatpush.msra.mxu0 %v530
        %v532 = vand.u32 %v176, 4294901760
        %533 = vmatpush.msra.mxu0 %v532
        %v534 = vand.u32 %v175, 4294901760
        %535 = vmatpush.msra.mxu0 %v534
        %v536 = vand.u32 %v174, 4294901760
        %537 = vmatpush.msra.mxu0 %v536
        %v538 = vand.u32 %v173, 4294901760
        %539 = vmatpush.msra.mxu0 %v538
        %v540 = vand.u32 %v172, 4294901760
        %541 = vmatpush.msra.mxu0 %v540
        %v542 = vand.u32 %v170, 4294901760
        %543 = vmatmul.f32.gmra.mxu0 %v542
        %v544 = vpop.f32.mrf.mxu0
        %v545 = vadd.f32 %v508, %v544
        %546 = vdwg.mxu0
        %v547 = vand.u32 %v203, 4294901760
        %548 = vmatpush.msra.mxu0 %v547
        %v549 = vand.u32 %v202, 4294901760
        %550 = vmatpush.msra.mxu0 %v549
        %v551 = vand.u32 %v201, 4294901760
        %552 = vmatpush.msra.mxu0 %v551
        %v553 = vand.u32 %v200, 4294901760
        %554 = vmatpush.msra.mxu0 %v553
        %v555 = vand.u32 %v199, 4294901760
        %556 = vmatpush.msra.mxu0 %v555
        %v557 = vand.u32 %v198, 4294901760
        %558 = vmatpush.msra.mxu0 %v557
        %v559 = vand.u32 %v197, 4294901760
        %560 = vmatpush.msra.mxu0 %v559
        %v561 = vand.u32 %v196, 4294901760
        %562 = vmatpush.msra.mxu0 %v561
        %v563 = vand.u32 %v195, 4294901760
        %564 = vmatpush.msra.mxu0 %v563
        %v565 = vand.u32 %v194, 4294901760
        %566 = vmatpush.msra.mxu0 %v565
        %v567 = vand.u32 %v193, 4294901760
        %568 = vmatpush.msra.mxu0 %v567
        %v569 = vand.u32 %v192, 4294901760
        %570 = vmatpush.msra.mxu0 %v569
        %v571 = vand.u32 %v191, 4294901760
        %572 = vmatpush.msra.mxu0 %v571
        %v573 = vand.u32 %v190, 4294901760
        %574 = vmatpush.msra.mxu0 %v573
        %v575 = vand.u32 %v189, 4294901760
        %576 = vmatpush.msra.mxu0 %v575
        %v577 = vand.u32 %v188, 4294901760
        %578 = vmatpush.msra.mxu0 %v577
        %v579 = vand.u32 %v171, 4294901760
        %v580 = vsub.f32 %v171, %v579
        %v581 = vand.u32 %v580, 4294901760
        %v582 = vsub.f32 %v580, %v581
        %v583 = vand.u32 %v582, 4294901760
        %584 = vmatmul.f32.gmra.mxu0 %v583
        %v585 = vpop.f32.mrf.mxu0
        %v586 = vadd.f32 %v545, %v585
        %587 = vdwg.mxu0
        %v588 = vand.u32 %v203, 4294901760
        %v589 = vsub.f32 %v203, %v588
        %v590 = vand.u32 %v589, 4294901760
        %v591 = vsub.f32 %v589, %v590
        %v592 = vand.u32 %v591, 4294901760
        %593 = vmatpush.msra.mxu0 %v592
        %v594 = vand.u32 %v202, 4294901760
        %v595 = vsub.f32 %v202, %v594
        %v596 = vand.u32 %v595, 4294901760
        %v597 = vsub.f32 %v595, %v596
        %v598 = vand.u32 %v597, 4294901760
        %599 = vmatpush.msra.mxu0 %v598
        %v600 = vand.u32 %v201, 4294901760
        %v601 = vsub.f32 %v201, %v600
        %v602 = vand.u32 %v601, 4294901760
        %v603 = vsub.f32 %v601, %v602
        %v604 = vand.u32 %v603, 4294901760
        %605 = vmatpush.msra.mxu0 %v604
        %v606 = vand.u32 %v200, 4294901760
        %v607 = vsub.f32 %v200, %v606
        %v608 = vand.u32 %v607, 4294901760
        %v609 = vsub.f32 %v607, %v608
        %v610 = vand.u32 %v609, 4294901760
        %611 = vmatpush.msra.mxu0 %v610
        %v612 = vand.u32 %v199, 4294901760
        %v613 = vsub.f32 %v199, %v612
        %v614 = vand.u32 %v613, 4294901760
        %v615 = vsub.f32 %v613, %v614
        %v616 = vand.u32 %v615, 4294901760
        %617 = vmatpush.msra.mxu0 %v616
        %v618 = vand.u32 %v198, 4294901760
        %v619 = vsub.f32 %v198, %v618
        %v620 = vand.u32 %v619, 4294901760
        %v621 = vsub.f32 %v619, %v620
        %v622 = vand.u32 %v621, 4294901760
        %623 = vmatpush.msra.mxu0 %v622
        %v624 = vand.u32 %v197, 4294901760
        %v625 = vsub.f32 %v197, %v624
        %v626 = vand.u32 %v625, 4294901760
        %v627 = vsub.f32 %v625, %v626
        %v628 = vand.u32 %v627, 4294901760
        %629 = vmatpush.msra.mxu0 %v628
        %v630 = vand.u32 %v196, 4294901760
        %v631 = vsub.f32 %v196, %v630
        %v632 = vand.u32 %v631, 4294901760
        %v633 = vsub.f32 %v631, %v632
        %v634 = vand.u32 %v633, 4294901760
        %635 = vmatpush.msra.mxu0 %v634
        %v636 = vand.u32 %v195, 4294901760
        %v637 = vsub.f32 %v195, %v636
        %v638 = vand.u32 %v637, 4294901760
        %v639 = vsub.f32 %v637, %v638
        %v640 = vand.u32 %v639, 4294901760
        %641 = vmatpush.msra.mxu0 %v640
        %v642 = vand.u32 %v194, 4294901760
        %v643 = vsub.f32 %v194, %v642
        %v644 = vand.u32 %v643, 4294901760
        %v645 = vsub.f32 %v643, %v644
        %v646 = vand.u32 %v645, 4294901760
        %647 = vmatpush.msra.mxu0 %v646
        %v648 = vand.u32 %v193, 4294901760
        %v649 = vsub.f32 %v193, %v648
        %v650 = vand.u32 %v649, 4294901760
        %v651 = vsub.f32 %v649, %v650
        %v652 = vand.u32 %v651, 4294901760
        %653 = vmatpush.msra.mxu0 %v652
        %v654 = vand.u32 %v192, 4294901760
        %v655 = vsub.f32 %v192, %v654
        %v656 = vand.u32 %v655, 4294901760
        %v657 = vsub.f32 %v655, %v656
        %v658 = vand.u32 %v657, 4294901760
        %659 = vmatpush.msra.mxu0 %v658
        %v660 = vand.u32 %v191, 4294901760
        %v661 = vsub.f32 %v191, %v660
        %v662 = vand.u32 %v661, 4294901760
        %v663 = vsub.f32 %v661, %v662
        %v664 = vand.u32 %v663, 4294901760
        %665 = vmatpush.msra.mxu0 %v664
        %v666 = vand.u32 %v190, 4294901760
        %v667 = vsub.f32 %v190, %v666
        %v668 = vand.u32 %v667, 4294901760
        %v669 = vsub.f32 %v667, %v668
        %v670 = vand.u32 %v669, 4294901760
        %671 = vmatpush.msra.mxu0 %v670
        %v672 = vand.u32 %v189, 4294901760
        %v673 = vsub.f32 %v189, %v672
        %v674 = vand.u32 %v673, 4294901760
        %v675 = vsub.f32 %v673, %v674
        %v676 = vand.u32 %v675, 4294901760
        %677 = vmatpush.msra.mxu0 %v676
        %v678 = vand.u32 %v188, 4294901760
        %v679 = vsub.f32 %v188, %v678
        %v680 = vand.u32 %v679, 4294901760
        %v681 = vsub.f32 %v679, %v680
        %v682 = vand.u32 %v681, 4294901760
        %683 = vmatpush.msra.mxu0 %v682
        %v684 = vand.u32 %v171, 4294901760
        %685 = vmatmul.f32.gmra.mxu0 %v684
        %v686 = vpop.f32.mrf.mxu0
        %v687 = vadd.f32 %v586, %v686
        %688 = vdwg.mxu0
        %v689 = vand.u32 %v203, 4294901760
        %v690 = vsub.f32 %v203, %v689
        %691 = vmatpush.msra.mxu0 %v690
        %v692 = vand.u32 %v202, 4294901760
        %v693 = vsub.f32 %v202, %v692
        %694 = vmatpush.msra.mxu0 %v693
        %v695 = vand.u32 %v201, 4294901760
        %v696 = vsub.f32 %v201, %v695
        %697 = vmatpush.msra.mxu0 %v696
        %v698 = vand.u32 %v200, 4294901760
        %v699 = vsub.f32 %v200, %v698
        %700 = vmatpush.msra.mxu0 %v699
        %v701 = vand.u32 %v199, 4294901760
        %v702 = vsub.f32 %v199, %v701
        %703 = vmatpush.msra.mxu0 %v702
        %v704 = vand.u32 %v198, 4294901760
        %v705 = vsub.f32 %v198, %v704
        %706 = vmatpush.msra.mxu0 %v705
        %v707 = vand.u32 %v197, 4294901760
        %v708 = vsub.f32 %v197, %v707
        %709 = vmatpush.msra.mxu0 %v708
        %v710 = vand.u32 %v196, 4294901760
        %v711 = vsub.f32 %v196, %v710
        %712 = vmatpush.msra.mxu0 %v711
        %v713 = vand.u32 %v195, 4294901760
        %v714 = vsub.f32 %v195, %v713
        %715 = vmatpush.msra.mxu0 %v714
        %v716 = vand.u32 %v194, 4294901760
        %v717 = vsub.f32 %v194, %v716
        %718 = vmatpush.msra.mxu0 %v717
        %v719 = vand.u32 %v193, 4294901760
        %v720 = vsub.f32 %v193, %v719
        %721 = vmatpush.msra.mxu0 %v720
        %v722 = vand.u32 %v192, 4294901760
        %v723 = vsub.f32 %v192, %v722
        %724 = vmatpush.msra.mxu0 %v723
        %v725 = vand.u32 %v191, 4294901760
        %v726 = vsub.f32 %v191, %v725
        %727 = vmatpush.msra.mxu0 %v726
        %v728 = vand.u32 %v190, 4294901760
        %v729 = vsub.f32 %v190, %v728
        %730 = vmatpush.msra.mxu0 %v729
        %v731 = vand.u32 %v189, 4294901760
        %v732 = vsub.f32 %v189, %v731
        %733 = vmatpush.msra.mxu0 %v732
        %v734 = vand.u32 %v188, 4294901760
        %v735 = vsub.f32 %v188, %v734
        %736 = vmatpush.msra.mxu0 %v735
        %v737 = vand.u32 %v171, 4294901760
        %v738 = vsub.f32 %v171, %v737
        %739 = vmatmul.f32.gmra.mxu0 %v738
        %v740 = vpop.f32.mrf.mxu0
        %v741 = vadd.f32 %v687, %v740
        %742 = vdwg.mxu0
        %v743 = vand.u32 %v203, 4294901760
        %744 = vmatpush.msra.mxu0 %v743
        %v745 = vand.u32 %v202, 4294901760
        %746 = vmatpush.msra.mxu0 %v745
        %v747 = vand.u32 %v201, 4294901760
        %748 = vmatpush.msra.mxu0 %v747
        %v749 = vand.u32 %v200, 4294901760
        %750 = vmatpush.msra.mxu0 %v749
        %v751 = vand.u32 %v199, 4294901760
        %752 = vmatpush.msra.mxu0 %v751
        %v753 = vand.u32 %v198, 4294901760
        %754 = vmatpush.msra.mxu0 %v753
        %v755 = vand.u32 %v197, 4294901760
        %756 = vmatpush.msra.mxu0 %v755
        %v757 = vand.u32 %v196, 4294901760
        %758 = vmatpush.msra.mxu0 %v757
        %v759 = vand.u32 %v195, 4294901760
        %760 = vmatpush.msra.mxu0 %v759
        %v761 = vand.u32 %v194, 4294901760
        %762 = vmatpush.msra.mxu0 %v761
        %v763 = vand.u32 %v193, 4294901760
        %764 = vmatpush.msra.mxu0 %v763
        %v765 = vand.u32 %v192, 4294901760
        %766 = vmatpush.msra.mxu0 %v765
        %v767 = vand.u32 %v191, 4294901760
        %768 = vmatpush.msra.mxu0 %v767
        %v769 = vand.u32 %v190, 4294901760
        %770 = vmatpush.msra.mxu0 %v769
        %v771 = vand.u32 %v189, 4294901760
        %772 = vmatpush.msra.mxu0 %v771
        %v773 = vand.u32 %v188, 4294901760
        %774 = vmatpush.msra.mxu0 %v773
        %v775 = vand.u32 %v171, 4294901760
        %v776 = vsub.f32 %v171, %v775
        %v777 = vand.u32 %v776, 4294901760
        %778 = vmatmul.f32.gmra.mxu0 %v777
        %v779 = vpop.f32.mrf.mxu0
        %v780 = vadd.f32 %v741, %v779
        %781 = vdwg.mxu0
        %v782 = vand.u32 %v203, 4294901760
        %v783 = vsub.f32 %v203, %v782
        %v784 = vand.u32 %v783, 4294901760
        %785 = vmatpush.msra.mxu0 %v784
        %v786 = vand.u32 %v202, 4294901760
        %v787 = vsub.f32 %v202, %v786
        %v788 = vand.u32 %v787, 4294901760
        %789 = vmatpush.msra.mxu0 %v788
        %v790 = vand.u32 %v201, 4294901760
        %v791 = vsub.f32 %v201, %v790
        %v792 = vand.u32 %v791, 4294901760
        %793 = vmatpush.msra.mxu0 %v792
        %v794 = vand.u32 %v200, 4294901760
        %v795 = vsub.f32 %v200, %v794
        %v796 = vand.u32 %v795, 4294901760
        %797 = vmatpush.msra.mxu0 %v796
        %v798 = vand.u32 %v199, 4294901760
        %v799 = vsub.f32 %v199, %v798
        %v800 = vand.u32 %v799, 4294901760
        %801 = vmatpush.msra.mxu0 %v800
        %v802 = vand.u32 %v198, 4294901760
        %v803 = vsub.f32 %v198, %v802
        %v804 = vand.u32 %v803, 4294901760
        %805 = vmatpush.msra.mxu0 %v804
        %v806 = vand.u32 %v197, 4294901760
        %v807 = vsub.f32 %v197, %v806
        %v808 = vand.u32 %v807, 4294901760
        %809 = vmatpush.msra.mxu0 %v808
        %v810 = vand.u32 %v196, 4294901760
        %v811 = vsub.f32 %v196, %v810
        %v812 = vand.u32 %v811, 4294901760
        %813 = vmatpush.msra.mxu0 %v812
        %v814 = vand.u32 %v195, 4294901760
        %v815 = vsub.f32 %v195, %v814
        %v816 = vand.u32 %v815, 4294901760
        %817 = vmatpush.msra.mxu0 %v816
        %v818 = vand.u32 %v194, 4294901760
        %v819 = vsub.f32 %v194, %v818
        %v820 = vand.u32 %v819, 4294901760
        %821 = vmatpush.msra.mxu0 %v820
        %v822 = vand.u32 %v193, 4294901760
        %v823 = vsub.f32 %v193, %v822
        %v824 = vand.u32 %v823, 4294901760
        %825 = vmatpush.msra.mxu0 %v824
        %v826 = vand.u32 %v192, 4294901760
        %v827 = vsub.f32 %v192, %v826
        %v828 = vand.u32 %v827, 4294901760
        %829 = vmatpush.msra.mxu0 %v828
        %v830 = vand.u32 %v191, 4294901760
        %v831 = vsub.f32 %v191, %v830
        %v832 = vand.u32 %v831, 4294901760
        %833 = vmatpush.msra.mxu0 %v832
        %v834 = vand.u32 %v190, 4294901760
        %v835 = vsub.f32 %v190, %v834
        %v836 = vand.u32 %v835, 4294901760
        %837 = vmatpush.msra.mxu0 %v836
        %v838 = vand.u32 %v189, 4294901760
        %v839 = vsub.f32 %v189, %v838
        %v840 = vand.u32 %v839, 4294901760
        %841 = vmatpush.msra.mxu0 %v840
        %v842 = vand.u32 %v188, 4294901760
        %v843 = vsub.f32 %v188, %v842
        %v844 = vand.u32 %v843, 4294901760
        %845 = vmatpush.msra.mxu0 %v844
        %v846 = vand.u32 %v171, 4294901760
        %847 = vmatmul.f32.gmra.mxu0 %v846
        %v848 = vpop.f32.mrf.mxu0
        %v849 = vadd.f32 %v780, %v848
        %850 = vdwg.mxu0
        %v851 = vand.u32 %v203, 4294901760
        %852 = vmatpush.msra.mxu0 %v851
        %v853 = vand.u32 %v202, 4294901760
        %854 = vmatpush.msra.mxu0 %v853
        %v855 = vand.u32 %v201, 4294901760
        %856 = vmatpush.msra.mxu0 %v855
        %v857 = vand.u32 %v200, 4294901760
        %858 = vmatpush.msra.mxu0 %v857
        %v859 = vand.u32 %v199, 4294901760
        %860 = vmatpush.msra.mxu0 %v859
        %v861 = vand.u32 %v198, 4294901760
        %862 = vmatpush.msra.mxu0 %v861
        %v863 = vand.u32 %v197, 4294901760
        %864 = vmatpush.msra.mxu0 %v863
        %v865 = vand.u32 %v196, 4294901760
        %866 = vmatpush.msra.mxu0 %v865
        %v867 = vand.u32 %v195, 4294901760
        %868 = vmatpush.msra.mxu0 %v867
        %v869 = vand.u32 %v194, 4294901760
        %870 = vmatpush.msra.mxu0 %v869
        %v871 = vand.u32 %v193, 4294901760
        %872 = vmatpush.msra.mxu0 %v871
        %v873 = vand.u32 %v192, 4294901760
        %874 = vmatpush.msra.mxu0 %v873
        %v875 = vand.u32 %v191, 4294901760
        %876 = vmatpush.msra.mxu0 %v875
        %v877 = vand.u32 %v190, 4294901760
        %878 = vmatpush.msra.mxu0 %v877
        %v879 = vand.u32 %v189, 4294901760
        %880 = vmatpush.msra.mxu0 %v879
        %v881 = vand.u32 %v188, 4294901760
        %882 = vmatpush.msra.mxu0 %v881
        %v883 = vand.u32 %v171, 4294901760
        %884 = vmatmul.f32.gmra.mxu0 %v883
        %v885 = vpop.f32.mrf.mxu0
        %v886 = vadd.f32 %v849, %v885
        %887 = vdwg.mxu0
        %888 = vst [vmem:[%s164] sm:$0xff] %v886
        %s889 = sand.u32 %s94, 1
        %s890 = scalar_lea.sflag [#allocation4], %s889
        %s891 = sand.u32 %s94, 1
        %s892 = smul.addr %s891, 8
        %s893 = scalar_lea.vmem [#allocation3], %s892
        // Predicated region
        $region33: #{circle_model_v0_forward.1} parent=31 // pred_check
          %p894 = pneg %p104
        $region34: #{circle_model_v0_forward.1} parent=31 // pred_check_branch
          %896 = sbr.rel (%p894) target = $region36
        $region35: #{circle_model_v0_forward.1} parent=31 // pred_region
          %898 = vsyncadd %s890, 0
          %s899 = smul.addr %s18, 8
          %s900 = scalar_lea.hbm %s3, %s899
          %s902 = sshll.u32 %s893, 4
          %s903 = int_to_ptr.vmem [resolvable:$true] %s902
          %s904 = sshll.u32 %s900, 4
          %s905 = int_to_ptr.hbm [resolvable:$true] %s904
          %907 = dma.vmem_to_hbm [thread:$0]  %s903, 128, %s905, %s890
        $region36: #{circle_model_v0_forward.1} parent=31 // pred_fallthru
          _
      $region32: #{circle_model_v0_forward.1} parent=5 // pred_fallthru
        _
      %p908 = scmp.le.s32.totalorder 2, %s13
      // Predicated region
      $region37: #{circle_model_v0_forward.1} parent=5 // pred_check
        %p909 = pneg %p908
      $region38: #{circle_model_v0_forward.1} parent=5 // pred_check_branch
        %911 = sbr.rel (%p909) target = $region40
      $region39: #{circle_model_v0_forward.1} parent=5 // pred_region
        %s912 = ssub.s32 %s13, 2
        // Predicated region
        $region41: #{circle_model_v0_forward.1} parent=39 // pred_check
          %p913 = pneg %p110
        $region42: #{circle_model_v0_forward.1} parent=39 // pred_check_branch
          %915 = sbr.rel (%p913) target = $region44
        $region43: #{circle_model_v0_forward.1} parent=39 // pred_region
          %s916 = sand.u32 %s95, 1
          %s917 = scalar_lea.sflag [#allocation4], %s916
          %s918 = sand.u32 %s95, 1
          %s919 = smul.addr %s918, 8
          %s920 = scalar_lea.vmem [#allocation3], %s919
          %922 = dma.done %s917, 128
        $region44: #{circle_model_v0_forward.1} parent=39 // pred_fallthru
          _
      $region40: #{circle_model_v0_forward.1} parent=5 // pred_fallthru
        _
    $region6: #{circle_model_v0_forward.1} parent=1 // loop_footer
      %s17 = sadd.s32 1, %s13
    $region7: #{circle_model_v0_forward.1} parent=1 // loop_footer_branch
      %12 = sbr.rel target = $region3
    $region8: #{circle_model_v0_forward.1} parent=1 // loop_exit
      _
    %923 = vsyncpa [#allocation4], 1
    %s924 = scalar_lea.sflag [#allocation4], 1
    %925 = vsyncpa %s924, 1

</llo_original>
